<compile_context>
chip_gen: v6e
topology: v6e:2x2x1
jax: 0.10.0
libtpu: 0.0.40
codegen_flags: <defaults>
</compile_context>

<pallas_src>
import jax
import jax.numpy as jnp
from jax.experimental import pallas as pl
from jax.experimental.pallas import tpu as pltpu

INPUT_SIZE = 8
HIDDEN_SIZE = 64
OUTPUT_SIZE = 3
NUM_LAYERS = 2  # hard-wired to the module default (2 layers)


def rnn_kernel(x_ref,      # (B*S, I)  f32, batch-major rows (row = b*S + t)
               wih0_ref,   # (I, 2H)   bf16 = [W_ih0^T | 0]
               wcomb_ref,  # (2H, 2H)  bf16 = [[W_hh0^T, W_ih1^T], [0, W_hh1^T]]
               b01_ref,    # (1, 2H)   f32  = [b_ih0 + b_hh0 | b_ih1 + b_hh1]
               fcw_ref,    # (2H, O)   bf16 = [0 ; fc.weight^T]
               fcb_ref,    # (1, O)    f32  = fc.bias
               out_ref):   # (B, O)    f32
    BS = x_ref.shape[0]
    H2 = wcomb_ref.shape[0]
    H = H2 // 2
    B = out_ref.shape[0]
    S = BS // B

    # Layer-0 input projection for ALL timesteps in one MXU op (independent of the
    # recurrence), with both layer biases folded in:
    #   proj[b*S + t] = [ x(b,t) @ W_ih0^T + b0  |  b1 ]        (S*B, 2H) f32
    proj = (jnp.dot(x_ref[...].astype(jnp.bfloat16), wih0_ref[...],
                    preferred_element_type=jnp.float32)
            + b01_ref[...])
    # Tile-aligned split of the row dim (S == 8 == f32 sublane tile): effectively free.
    proj = proj.reshape(B, S, H2)

    wcomb = wcomb_ref[...]          # (2H, 2H) bf16
    b01 = b01_ref[...]              # (1, 2H)  f32

    # Prologue: state(0) = [h0(0) | h1(-1)] = [tanh(x(0) @ W_ih0^T + b0) | 0].
    col = jax.lax.broadcasted_iota(jnp.int32, (B, H2), dimension=1)
    state = jnp.where(col < H, jnp.tanh(proj[:, 0, :]), 0.0).astype(jnp.bfloat16)

    # Skewed recurrence: ONE fused (B,2H)@(2H,2H) matmul + one add + one tanh + one
    # bf16 cast per step.  state(s) = [h0(s) | h1(s-1)] -> state(s+1) = [h0(s+1) | h1(s)].
    # TODO(synk): nn.RNN applies inter-layer dropout only in training; this reproduces
    # the eval-mode forward (no dropout).
    # TODO(synk): for long S, replace the full unroll with lax.fori_loop(..., unroll=4..8)
    # and keep `proj` in a VMEM scratch to bound code size / vreg live ranges; at S=8 a
    # full compile-time unroll is optimal.
    for s in range(S):
        acc = jnp.dot(state, wcomb, preferred_element_type=jnp.float32)   # (B, 2H) f32
        # Addend cols 0:H = xproj(s+1) (+b0); cols H:2H = b1.  On the last step the h0
        # half of the result is dead (zero rows of fcw kill it), so only b1 is needed.
        add = proj[:, s + 1, :] if s + 1 < S else b01
        state = jnp.tanh(acc + add).astype(jnp.bfloat16)

    # state = [dead h0 | h1(S-1)]; fc rows 0:H are zero -> logits = h1(S-1) @ fc_w^T + b.
    logits = jnp.dot(state, fcw_ref[...],
                     preferred_element_type=jnp.float32) + fcb_ref[...]
    out_ref[...] = jnp.maximum(logits, 0.0)


def prepare_params(params):
    """One-time weight folding: skewed/fused weights, bias sums, zero pads, bf16 casts."""
    (w_ih0, w_hh0, b_ih0, b_hh0,
     w_ih1, w_hh1, b_ih1, b_hh1,
     fc_w, fc_b) = params
    H, I, O = HIDDEN_SIZE, INPUT_SIZE, OUTPUT_SIZE

    # Input-projection weight padded to 2H output columns (upper half zero so the h1
    # half of the projected slab carries only the b1 bias).
    wih0_pad = jnp.concatenate(
        [jnp.transpose(w_ih0), jnp.zeros((I, H), jnp.float32)], axis=1
    ).astype(jnp.bfloat16)                                              # (I, 2H)

    # Combined per-step recurrent weight for the layer-skewed state [h0(t) | h1(t-1)]:
    #   cols 0:H  <- [W_hh0^T ; 0]        (next h0 pre-activation, minus the x term)
    #   cols H:2H <- [W_ih1^T ; W_hh1^T]  (h1(t) pre-activation, minus b1)
    top = jnp.concatenate([jnp.transpose(w_hh0), jnp.transpose(w_ih1)], axis=1)   # (H, 2H)
    bot = jnp.concatenate([jnp.zeros((H, H), jnp.float32),
                           jnp.transpose(w_hh1)], axis=1)                          # (H, 2H)
    wcomb = jnp.concatenate([top, bot], axis=0).astype(jnp.bfloat16)    # (2H, 2H)

    b01 = jnp.concatenate([b_ih0 + b_hh0,
                           b_ih1 + b_hh1])[None, :].astype(jnp.float32)  # (1, 2H)

    # fc weight padded to 2H rows: rows 0:H zero so the dead h0 half of the final state
    # never reaches the logits; bf16 operands for a single-pass MXU epilogue.
    fcw_pad = jnp.concatenate(
        [jnp.zeros((H, O), jnp.float32), jnp.transpose(fc_w)], axis=0
    ).astype(jnp.bfloat16)                                               # (2H, O)
    fcb = fc_b[None, :].astype(jnp.float32)                              # (1, O)

    return (wih0_pad, wcomb, b01, fcw_pad, fcb)


def rnn_model_forward(x, prepped):
    """x: (batch, seq, input_size) f32 -> (batch, output_size) f32."""
    B, S, I = x.shape
    # Contiguous reshape only (a bitcast: no transpose / pad / cast ops per call).
    x2d = x.reshape(B * S, I)

    vmem = lambda: pl.BlockSpec(memory_space=pltpu.MemorySpace.VMEM)
    return pl.pallas_call(
        rnn_kernel,
        out_shape=jax.ShapeDtypeStruct((B, OUTPUT_SIZE), jnp.float32),
        in_specs=[vmem() for _ in range(6)],
        out_specs=vmem(),
        # Entire working set (weights + sequence + activations) is < 100 KiB; keep the
        # scoped-VMEM claim small (v7x has only 64 MiB of VMEM).
        # TODO(synk): for large serving batches, add a batch grid axis with
        # dimension_semantics=("parallel",) so v7x's two TensorCores split the batch.
        compiler_params=pltpu.CompilerParams(vmem_limit_bytes=4 * 1024 * 1024),
    )(x2d, *prepped)


def init_params(key):
    """Deterministic init matching PyTorch shapes (uniform +-1/sqrt(H))."""
    H, I, O = HIDDEN_SIZE, INPUT_SIZE, OUTPUT_SIZE
    bound = 1.0 / (H ** 0.5)
    keys = jax.random.split(key, 10)
    u = lambda k, shape: jax.random.uniform(k, shape, jnp.float32, -bound, bound)
    w_ih0 = u(keys[0], (H, I))
    w_hh0 = u(keys[1], (H, H))
    b_ih0 = u(keys[2], (H,))
    b_hh0 = u(keys[3], (H,))
    w_ih1 = u(keys[4], (H, H))
    w_hh1 = u(keys[5], (H, H))
    b_ih1 = u(keys[6], (H,))
    b_hh1 = u(keys[7], (H,))
    fc_w = u(keys[8], (O, H))
    fc_b = u(keys[9], (O,))
    return (w_ih0, w_hh0, b_ih0, b_hh0,
            w_ih1, w_hh1, b_ih1, b_hh1,
            fc_w, fc_b)


def reference_forward(x, params):
    """Pure-JAX f32 reference of the PyTorch forward (eval mode)."""
    (w_ih0, w_hh0, b_ih0, b_hh0,
     w_ih1, w_hh1, b_ih1, b_hh1,
     fc_w, fc_b) = params
    B, S, _ = x.shape
    h0 = jnp.zeros((B, HIDDEN_SIZE), jnp.float32)
    h1 = jnp.zeros((B, HIDDEN_SIZE), jnp.float32)
    for t in range(S):
        xt = x[:, t, :]
        h0 = jnp.tanh(xt @ w_ih0.T + b_ih0 + h0 @ w_hh0.T + b_hh0)
        h1 = jnp.tanh(h0 @ w_ih1.T + b_ih1 + h1 @ w_hh1.T + b_hh1)
    return jnp.maximum(h1 @ fc_w.T + fc_b, 0.0)


if __name__ == "__main__":
    key = jax.random.PRNGKey(0)
    k_x, k_p = jax.random.split(key)

    batch, seq = 2, 8
    x = jax.random.normal(k_x, (batch, seq, INPUT_SIZE), jnp.float32)
    params = init_params(k_p)

    # Fold/transpose/pad/cast weights once (not per call).
    prepped = jax.block_until_ready(prepare_params(params))

    fwd = jax.jit(rnn_model_forward)
    out = jax.block_until_ready(fwd(x, prepped))

    ref = reference_forward(x, params)
    assert out.shape == (batch, OUTPUT_SIZE)
    # bf16 MXU operands (f32 accumulation) -> relaxed tolerance vs the f32 reference.
    assert jnp.allclose(out, ref, atol=2e-2, rtol=2e-2)

    print("KERNEL_OK")
</pallas_src>

<mosaic_0001>
module attributes {stable_mosaic.version = 11 : i64} {
  func.func @rnn_kernel(%arg0: memref<16x8xf32, #tpu.memory_space<vmem>>, %arg1: memref<8x128xbf16, #tpu.memory_space<vmem>>, %arg2: memref<128x128xbf16, #tpu.memory_space<vmem>>, %arg3: memref<1x128xf32, #tpu.memory_space<vmem>>, %arg4: memref<128x3xbf16, #tpu.memory_space<vmem>>, %arg5: memref<1x3xf32, #tpu.memory_space<vmem>>, %arg6: memref<2x3xf32, #tpu.memory_space<vmem>>) attributes {dimension_semantics = [], scalar_prefetch = 0 : i64, scratch_operands = 0 : i64, tpu.core_type = #tpu.core_type<tc>} {
    %c0 = arith.constant 0 : index
    %c0_0 = arith.constant 0 : index
    %0 = vector.load %arg0[%c0, %c0_0] : memref<16x8xf32, #tpu.memory_space<vmem>>, vector<16x8xf32>
    %1 = arith.truncf %0 : vector<16x8xf32> to vector<16x8xbf16>
    %c0_1 = arith.constant 0 : index
    %c0_2 = arith.constant 0 : index
    %2 = vector.load %arg1[%c0_1, %c0_2] : memref<8x128xbf16, #tpu.memory_space<vmem>>, vector<8x128xbf16>
    %cst = arith.constant dense<0.000000e+00> : vector<16x128xf32>
    %3 = tpu.matmul %1, %2, %cst {dimension_numbers = #tpu.dot_dimension_numbers<[1], [0], [0], [1], [0, 0, 1, 1], [], []>} : vector<16x8xbf16>, vector<8x128xbf16>, vector<16x128xf32> -> vector<16x128xf32>
    %c0_3 = arith.constant 0 : index
    %c0_4 = arith.constant 0 : index
    %4 = vector.load %arg3[%c0_3, %c0_4] : memref<1x128xf32, #tpu.memory_space<vmem>>, vector<1x128xf32>
    %5 = vector.broadcast %4 : vector<1x128xf32> to vector<16x128xf32>
    %6 = arith.addf %3, %5 : vector<16x128xf32>
    %7 = vector.shape_cast %6 : vector<16x128xf32> to vector<2x8x128xf32>
    %c0_5 = arith.constant 0 : index
    %c0_6 = arith.constant 0 : index
    %8 = vector.load %arg2[%c0_5, %c0_6] : memref<128x128xbf16, #tpu.memory_space<vmem>>, vector<128x128xbf16>
    %c0_7 = arith.constant 0 : index
    %c0_8 = arith.constant 0 : index
    %9 = vector.load %arg3[%c0_7, %c0_8] : memref<1x128xf32, #tpu.memory_space<vmem>>, vector<1x128xf32>
    %10 = tpu.iota {dimensions = array<i32: 1>} : vector<2x128xi32>
    %c64_i32 = arith.constant 64 : i32
    %11 = vector.broadcast %c64_i32 : i32 to vector<2x128xi32>
    %12 = arith.cmpi slt, %10, %11 : vector<2x128xi32>
    %13 = vector.extract_strided_slice %7 {offsets = [0, 0, 0], sizes = [2, 1, 128], strides = [1, 1, 1]} : vector<2x8x128xf32> to vector<2x1x128xf32>
    %14 = vector.shape_cast %13 : vector<2x1x128xf32> to vector<2x128xf32>
    %15 = math.tanh %14 : vector<2x128xf32>
    %cst_9 = arith.constant 0.000000e+00 : f32
    %16 = vector.broadcast %cst_9 : f32 to vector<2x128xf32>
    %17 = arith.select %12, %15, %16 : vector<2x128xi1>, vector<2x128xf32>
    %18 = arith.truncf %17 : vector<2x128xf32> to vector<2x128xbf16>
    %cst_10 = arith.constant dense<0.000000e+00> : vector<2x128xf32>
    %19 = tpu.matmul %18, %8, %cst_10 {dimension_numbers = #tpu.dot_dimension_numbers<[1], [0], [0], [1], [0, 0, 1, 1], [], []>} : vector<2x128xbf16>, vector<128x128xbf16>, vector<2x128xf32> -> vector<2x128xf32>
    %20 = vector.extract_strided_slice %7 {offsets = [0, 1, 0], sizes = [2, 1, 128], strides = [1, 1, 1]} : vector<2x8x128xf32> to vector<2x1x128xf32>
    %21 = vector.shape_cast %20 : vector<2x1x128xf32> to vector<2x128xf32>
    %22 = arith.addf %19, %21 : vector<2x128xf32>
    %23 = math.tanh %22 : vector<2x128xf32>
    %24 = arith.truncf %23 : vector<2x128xf32> to vector<2x128xbf16>
    %cst_11 = arith.constant dense<0.000000e+00> : vector<2x128xf32>
    %25 = tpu.matmul %24, %8, %cst_11 {dimension_numbers = #tpu.dot_dimension_numbers<[1], [0], [0], [1], [0, 0, 1, 1], [], []>} : vector<2x128xbf16>, vector<128x128xbf16>, vector<2x128xf32> -> vector<2x128xf32>
    %26 = vector.extract_strided_slice %7 {offsets = [0, 2, 0], sizes = [2, 1, 128], strides = [1, 1, 1]} : vector<2x8x128xf32> to vector<2x1x128xf32>
    %27 = vector.shape_cast %26 : vector<2x1x128xf32> to vector<2x128xf32>
    %28 = arith.addf %25, %27 : vector<2x128xf32>
    %29 = math.tanh %28 : vector<2x128xf32>
    %30 = arith.truncf %29 : vector<2x128xf32> to vector<2x128xbf16>
    %cst_12 = arith.constant dense<0.000000e+00> : vector<2x128xf32>
    %31 = tpu.matmul %30, %8, %cst_12 {dimension_numbers = #tpu.dot_dimension_numbers<[1], [0], [0], [1], [0, 0, 1, 1], [], []>} : vector<2x128xbf16>, vector<128x128xbf16>, vector<2x128xf32> -> vector<2x128xf32>
    %32 = vector.extract_strided_slice %7 {offsets = [0, 3, 0], sizes = [2, 1, 128], strides = [1, 1, 1]} : vector<2x8x128xf32> to vector<2x1x128xf32>
    %33 = vector.shape_cast %32 : vector<2x1x128xf32> to vector<2x128xf32>
    %34 = arith.addf %31, %33 : vector<2x128xf32>
    %35 = math.tanh %34 : vector<2x128xf32>
    %36 = arith.truncf %35 : vector<2x128xf32> to vector<2x128xbf16>
    %cst_13 = arith.constant dense<0.000000e+00> : vector<2x128xf32>
    %37 = tpu.matmul %36, %8, %cst_13 {dimension_numbers = #tpu.dot_dimension_numbers<[1], [0], [0], [1], [0, 0, 1, 1], [], []>} : vector<2x128xbf16>, vector<128x128xbf16>, vector<2x128xf32> -> vector<2x128xf32>
    %38 = vector.extract_strided_slice %7 {offsets = [0, 4, 0], sizes = [2, 1, 128], strides = [1, 1, 1]} : vector<2x8x128xf32> to vector<2x1x128xf32>
    %39 = vector.shape_cast %38 : vector<2x1x128xf32> to vector<2x128xf32>
    %40 = arith.addf %37, %39 : vector<2x128xf32>
    %41 = math.tanh %40 : vector<2x128xf32>
    %42 = arith.truncf %41 : vector<2x128xf32> to vector<2x128xbf16>
    %cst_14 = arith.constant dense<0.000000e+00> : vector<2x128xf32>
    %43 = tpu.matmul %42, %8, %cst_14 {dimension_numbers = #tpu.dot_dimension_numbers<[1], [0], [0], [1], [0, 0, 1, 1], [], []>} : vector<2x128xbf16>, vector<128x128xbf16>, vector<2x128xf32> -> vector<2x128xf32>
    %44 = vector.extract_strided_slice %7 {offsets = [0, 5, 0], sizes = [2, 1, 128], strides = [1, 1, 1]} : vector<2x8x128xf32> to vector<2x1x128xf32>
    %45 = vector.shape_cast %44 : vector<2x1x128xf32> to vector<2x128xf32>
    %46 = arith.addf %43, %45 : vector<2x128xf32>
    %47 = math.tanh %46 : vector<2x128xf32>
    %48 = arith.truncf %47 : vector<2x128xf32> to vector<2x128xbf16>
    %cst_15 = arith.constant dense<0.000000e+00> : vector<2x128xf32>
    %49 = tpu.matmul %48, %8, %cst_15 {dimension_numbers = #tpu.dot_dimension_numbers<[1], [0], [0], [1], [0, 0, 1, 1], [], []>} : vector<2x128xbf16>, vector<128x128xbf16>, vector<2x128xf32> -> vector<2x128xf32>
    %50 = vector.extract_strided_slice %7 {offsets = [0, 6, 0], sizes = [2, 1, 128], strides = [1, 1, 1]} : vector<2x8x128xf32> to vector<2x1x128xf32>
    %51 = vector.shape_cast %50 : vector<2x1x128xf32> to vector<2x128xf32>
    %52 = arith.addf %49, %51 : vector<2x128xf32>
    %53 = math.tanh %52 : vector<2x128xf32>
    %54 = arith.truncf %53 : vector<2x128xf32> to vector<2x128xbf16>
    %cst_16 = arith.constant dense<0.000000e+00> : vector<2x128xf32>
    %55 = tpu.matmul %54, %8, %cst_16 {dimension_numbers = #tpu.dot_dimension_numbers<[1], [0], [0], [1], [0, 0, 1, 1], [], []>} : vector<2x128xbf16>, vector<128x128xbf16>, vector<2x128xf32> -> vector<2x128xf32>
    %56 = vector.extract_strided_slice %7 {offsets = [0, 7, 0], sizes = [2, 1, 128], strides = [1, 1, 1]} : vector<2x8x128xf32> to vector<2x1x128xf32>
    %57 = vector.shape_cast %56 : vector<2x1x128xf32> to vector<2x128xf32>
    %58 = arith.addf %55, %57 : vector<2x128xf32>
    %59 = math.tanh %58 : vector<2x128xf32>
    %60 = arith.truncf %59 : vector<2x128xf32> to vector<2x128xbf16>
    %cst_17 = arith.constant dense<0.000000e+00> : vector<2x128xf32>
    %61 = tpu.matmul %60, %8, %cst_17 {dimension_numbers = #tpu.dot_dimension_numbers<[1], [0], [0], [1], [0, 0, 1, 1], [], []>} : vector<2x128xbf16>, vector<128x128xbf16>, vector<2x128xf32> -> vector<2x128xf32>
    %62 = vector.broadcast %9 : vector<1x128xf32> to vector<2x128xf32>
    %63 = arith.addf %61, %62 : vector<2x128xf32>
    %64 = math.tanh %63 : vector<2x128xf32>
    %65 = arith.truncf %64 : vector<2x128xf32> to vector<2x128xbf16>
    %c0_18 = arith.constant 0 : index
    %c0_19 = arith.constant 0 : index
    %66 = vector.load %arg4[%c0_18, %c0_19] : memref<128x3xbf16, #tpu.memory_space<vmem>>, vector<128x3xbf16>
    %cst_20 = arith.constant dense<0.000000e+00> : vector<2x3xf32>
    %67 = tpu.matmul %65, %66, %cst_20 {dimension_numbers = #tpu.dot_dimension_numbers<[1], [0], [0], [1], [0, 0, 1, 1], [], []>} : vector<2x128xbf16>, vector<128x3xbf16>, vector<2x3xf32> -> vector<2x3xf32>
    %c0_21 = arith.constant 0 : index
    %c0_22 = arith.constant 0 : index
    %68 = vector.load %arg5[%c0_21, %c0_22] : memref<1x3xf32, #tpu.memory_space<vmem>>, vector<1x3xf32>
    %69 = vector.broadcast %68 : vector<1x3xf32> to vector<2x3xf32>
    %70 = arith.addf %67, %69 : vector<2x3xf32>
    %cst_23 = arith.constant 0.000000e+00 : f32
    %71 = vector.broadcast %cst_23 : f32 to vector<2x3xf32>
    %72 = arith.maximumf %70, %71 : vector<2x3xf32>
    %c0_24 = arith.constant 0 : index
    %c0_25 = arith.constant 0 : index
    %73 = vector.load %arg6[%c0_24, %c0_25] : memref<2x3xf32, #tpu.memory_space<vmem>>, vector<2x3xf32>
    tpu.vector_store %arg6[%c0_24, %c0_25], %72 {strides = array<i32>} : memref<2x3xf32, #tpu.memory_space<vmem>>, vector<2x3xf32>,
    return
  }
}

</mosaic_0001>

<llo_original>
// kernel: rnn_model_forward.1
$region0: #{rnn_model_forward.1}
  #allocation0 [shape = 'u32[]', space=smem, size = 0x4, offset = 0x4, fixed_abs, tag = 'smem constant byte address 0x4 - core index']
  #allocation1 [shape = 'u32[144,128]{1,0:T(1,128)}', space=vmem, size = 0x12000, scoped, tag = 'internal scratch']
  %s0 = inlined_call_operand.hbm [shape: f32[16,8], index: 0, kind: input, shape index: {}]
  %s1 = inlined_call_operand.vmem [shape: bf16[8,128], index: 1, kind: input, shape index: {}]
  %s2 = inlined_call_operand.vmem [shape: bf16[128,128], index: 2, kind: input, shape index: {}]
  %s3 = inlined_call_operand.vmem [shape: f32[1,128], index: 3, kind: input, shape index: {}]
  %s4 = inlined_call_operand.vmem [shape: bf16[128,3], index: 4, kind: input, shape index: {}]
  %s5 = inlined_call_operand.vmem [shape: f32[1,3], index: 5, kind: input, shape index: {}]
  %s6 = inlined_call_operand.hbm [shape: f32[2,3], index: 6, kind: output, shape index: {}]
  %s7 = sld [smem:[#allocation0]]
  $region38: #{rnn_model_forward.1} parent=0
    _
  %s9 = ssub.s32 1, %s7
  %s10 = scalar_select 0, %s9, %s7
  $region1: #{rnn_model_forward.1} parent=0
    #allocation2 [shape = 'u8[8192]{0}', space=vmem, size = 0x2000, scoped, tag = 'input window, operand 0, single buffered']
    #allocation3 [shape = 's32[1]{0}', space=sflag, size = 0x4, scoped, tag = 'scoped memory for rnn_model_forward.1']
    #allocation4 [shape = 's32[1]{0}', space=sflag, size = 0x4, scoped, tag = 'scoped memory for rnn_model_forward.1']
    #allocation5 [shape = 'u8[1024]{0}', space=vmem, size = 0x400, scoped, tag = 'output window, operand 0, single buffered']
    %11 = vsyncpa [#allocation3], 0
    %12 = vsyncpa [#allocation4], 0
    // Predicated region
    $region2: #{rnn_model_forward.1} parent=1 // pred_check
      _
    $region3: #{rnn_model_forward.1} parent=1 // pred_check_branch
      %14 = sbr.rel (0) target = $region5
    $region4: #{rnn_model_forward.1} parent=1 // pred_region
      %s16 = ssub.s32 256, 256
      %17 = vsyncadd [#allocation3], %s16
      %s18 = sshll.u32 [#allocation2], 4
      %s19 = int_to_ptr.vmem [resolvable:$true] %s18
      %24 = dma.hbm_to_vmem [thread:$0]  %s0, 256, %s19, [#allocation3], 128, 128, 8
    $region5: #{rnn_model_forward.1} parent=1 // pred_fallthru
      _
    // Predicated region
    $region6: #{rnn_model_forward.1} parent=1 // pred_check
      _
    $region7: #{rnn_model_forward.1} parent=1 // pred_check_branch
      %26 = sbr.rel (0) target = $region9
    $region8: #{rnn_model_forward.1} parent=1 // pred_region
      _
    $region9: #{rnn_model_forward.1} parent=1 // pred_fallthru
      _
    // Predicated region
    $region10: #{rnn_model_forward.1} parent=1 // pred_check
      _
    $region11: #{rnn_model_forward.1} parent=1 // pred_check_branch
      %28 = sbr.rel (0) target = $region13
    $region12: #{rnn_model_forward.1} parent=1 // pred_region
      _
    $region13: #{rnn_model_forward.1} parent=1 // pred_fallthru
      _
    // Predicated region
    $region14: #{rnn_model_forward.1} parent=1 // pred_check
      _
    $region15: #{rnn_model_forward.1} parent=1 // pred_check_branch
      %30 = sbr.rel (0) target = $region17
    $region16: #{rnn_model_forward.1} parent=1 // pred_region
      _
    $region17: #{rnn_model_forward.1} parent=1 // pred_fallthru
      _
    // Predicated region
    $region18: #{rnn_model_forward.1} parent=1 // pred_check
      _
    $region19: #{rnn_model_forward.1} parent=1 // pred_check_branch
      %32 = sbr.rel (0) target = $region21
    $region20: #{rnn_model_forward.1} parent=1 // pred_region
      _
    $region21: #{rnn_model_forward.1} parent=1 // pred_fallthru
      _
    // Predicated region
    $region22: #{rnn_model_forward.1} parent=1 // pred_check
      _
    $region23: #{rnn_model_forward.1} parent=1 // pred_check_branch
      %34 = sbr.rel (0) target = $region25
    $region24: #{rnn_model_forward.1} parent=1 // pred_region
      _
    $region25: #{rnn_model_forward.1} parent=1 // pred_fallthru
      _
    // Predicated region
    $region26: #{rnn_model_forward.1} parent=1 // pred_check
      _
    $region27: #{rnn_model_forward.1} parent=1 // pred_check_branch
      %36 = sbr.rel (0) target = $region29
    $region28: #{rnn_model_forward.1} parent=1 // pred_region
      %37 = dma.done [#allocation3], 256
    $region29: #{rnn_model_forward.1} parent=1 // pred_fallthru
      _
    %v39 = vld [vmem:[#allocation2] sm:$0xff]
    %v40 = vld [vmem:[#allocation2 + $0x8] sm:$0xff]
    %v41 = vpack.c.bf16 %v40, %v39
    %v42 = vld [vmem:[%s1] sm:$0xf]
    %v43 = vld [vmem:[%s3] sm:$0x1]
    %v45 = vlaneseq
    %v46 = vshrl.u32 %v45, 7
    %v47 = vsub.s32 0, %v46
    %v48 = vrot.slane %v43, %v47
    %vm50 = vcmask 64512
    %v52 = vsel %vm50, %v41, 0
    %vm54 = vcmask 1043456
    %v56 = vsel %vm54, %v42, 0
    %58 = vmatprep.subr.bf16.mxu0 0
    %59 = vmatpush1.bf16.msra.mxu0 0
    %60 = vmatprep.subr.bf16.mxu0 0
    %61 = vmatpush1.bf16.msra.mxu0 0
    %62 = vmatprep.subr.bf16.mxu0 0
    %63 = vmatpush1.bf16.msra.mxu0 0
    %64 = vmatprep.subr.bf16.mxu0 0
    %65 = vmatpush1.bf16.msra.mxu0 0
    %66 = vmatprep.subr.bf16.mxu0 0
    %67 = vmatpush1.bf16.msra.mxu0 0
    %68 = vmatprep.subr.bf16.mxu0 0
    %69 = vmatpush1.bf16.msra.mxu0 0
    %70 = vmatprep.subr.bf16.mxu0 0
    %71 = vmatpush1.bf16.msra.mxu0 0
    %72 = vmatprep.subr.bf16.mxu0 0
    %73 = vmatpush1.bf16.msra.mxu0 %v56
    %74 = vmatprep.subr.bf16.mxu0 0
    %75 = vmatpush2.bf16.msra.mxu0 0
    %76 = vmatprep.subr.bf16.mxu0 0
    %77 = vmatpush2.bf16.msra.mxu0 0
    %78 = vmatprep.subr.bf16.mxu0 0
    %79 = vmatpush2.bf16.msra.mxu0 0
    %80 = vmatprep.subr.bf16.mxu0 0
    %81 = vmatpush2.bf16.msra.mxu0 0
    %82 = vmatprep.subr.bf16.mxu0 0
    %83 = vmatpush2.bf16.msra.mxu0 0
    %84 = vmatprep.subr.bf16.mxu0 0
    %85 = vmatpush2.bf16.msra.mxu0 0
    %86 = vmatprep.subr.bf16.mxu0 0
    %87 = vmatpush2.bf16.msra.mxu0 0
    %88 = vmatprep.subr.bf16.mxu0 0
    %89 = vmatpush2.bf16.msra.mxu0 0
    %90 = vmatprep.mubr.bf16.mxu0 0
    %91 = vmatmul.mubr.bf16.gmra.mxu0 %v52
    %v92 = vpop.f32.mrf.mxu0
    %v93 = vadd.f32 %v48, %v92
    %v94 = vpop.f32.mrf.mxu0
    %v95 = vpop.f32.mrf.mxu0
    %v96 = vadd.f32 %v48, %v95
    %v97 = vpop.f32.mrf.mxu0
    %98 = vdwg.mxu0
    %v99 = vld [vmem:[%s2] sm:$0xf]
    %v100 = vld [vmem:[%s2 + $0x4] sm:$0xf]
    %v101 = vld [vmem:[%s2 + $0x8] sm:$0xf]
    %v102 = vld [vmem:[%s2 + $0xc] sm:$0xf]
    %v103 = vld [vmem:[%s2 + $0x10] sm:$0xf]
    %v104 = vld [vmem:[%s2 + $0x14] sm:$0xf]
    %v105 = vld [vmem:[%s2 + $0x18] sm:$0xf]
    %v106 = vld [vmem:[%s2 + $0x1c] sm:$0xf]
    %v107 = vld [vmem:[%s2 + $0x20] sm:$0xf]
    %v108 = vld [vmem:[%s2 + $0x24] sm:$0xf]
    %v109 = vld [vmem:[%s2 + $0x28] sm:$0xf]
    %v110 = vld [vmem:[%s2 + $0x2c] sm:$0xf]
    %v111 = vld [vmem:[%s2 + $0x30] sm:$0xf]
    %v112 = vld [vmem:[%s2 + $0x34] sm:$0xf]
    %v113 = vld [vmem:[%s2 + $0x38] sm:$0xf]
    %v114 = vld [vmem:[%s2 + $0x3c] sm:$0xf]
    %v115 = vlaneseq
    %v116 = vand.u32 %v115, 127
    %vm117 = vcmp.lt.s32.totalorder %v116, 64
    %v118 = vtanh.pop %v93
    %v119 = vtanh.pop %v96
    %v122 = vrot.slane %v119, 7
    %vm123 = vcmask 1041409
    %v124 = vsel %vm123, %v122, %v118
    %v126 = vsel %vm117, %v124, 0.0
    %v127 = vpack.c.bf16 %v126, %v126
    %v144 = vunpack.c.l.b16 %v99
    %v145 = vunpack.c.l.b16 %v100
    %v146 = vunpack.c.l.b16 %v101
    %v147 = vunpack.c.l.b16 %v102
    %v148 = vunpack.c.l.b16 %v103
    %v149 = vunpack.c.l.b16 %v104
    %v150 = vunpack.c.l.b16 %v105
    %v151 = vunpack.c.l.b16 %v106
    %v152 = vunpack.c.l.b16 %v107
    %v153 = vunpack.c.l.b16 %v108
    %v154 = vunpack.c.l.b16 %v109
    %v155 = vunpack.c.l.b16 %v110
    %v156 = vunpack.c.l.b16 %v111
    %v157 = vunpack.c.l.b16 %v112
    %v158 = vunpack.c.l.b16 %v113
    %v159 = vunpack.c.l.b16 %v114
    %v160 = vpack.c.b16 %v145, %v144
    %v161 = vpack.c.b16 %v147, %v146
    %v162 = vpack.c.b16 %v149, %v148
    %v163 = vpack.c.b16 %v151, %v150
    %v164 = vpack.c.b16 %v153, %v152
    %v165 = vpack.c.b16 %v155, %v154
    %v166 = vpack.c.b16 %v157, %v156
    %v167 = vpack.c.b16 %v159, %v158
    %v178 = vrot.slane %v93, 1
    %v179 = vsel %vm123, %v96, %v178
    %181 = vmatprep.subr.bf16.mxu0 0
    %182 = vmatpush1.bf16.msra.mxu0 %v167
    %183 = vmatprep.subr.bf16.mxu0 0
    %184 = vmatpush1.bf16.msra.mxu0 %v166
    %185 = vmatprep.subr.bf16.mxu0 0
    %186 = vmatpush1.bf16.msra.mxu0 %v165
    %187 = vmatprep.subr.bf16.mxu0 0
    %188 = vmatpush1.bf16.msra.mxu0 %v164
    %189 = vmatprep.subr.bf16.mxu0 0
    %190 = vmatpush1.bf16.msra.mxu0 %v163
    %191 = vmatprep.subr.bf16.mxu0 0
    %192 = vmatpush1.bf16.msra.mxu0 %v162
    %193 = vmatprep.subr.bf16.mxu0 0
    %194 = vmatpush1.bf16.msra.mxu0 %v161
    %195 = vmatprep.subr.bf16.mxu0 0
    %196 = vmatpush1.bf16.msra.mxu0 %v160
    %197 = vmatprep.subr.bf16.mxu0 0
    %198 = vmatpush2.bf16.msra.mxu0 0
    %199 = vmatprep.subr.bf16.mxu0 0
    %200 = vmatpush2.bf16.msra.mxu0 0
    %201 = vmatprep.subr.bf16.mxu0 0
    %202 = vmatpush2.bf16.msra.mxu0 0
    %203 = vmatprep.subr.bf16.mxu0 0
    %204 = vmatpush2.bf16.msra.mxu0 0
    %205 = vmatprep.subr.bf16.mxu0 0
    %206 = vmatpush2.bf16.msra.mxu0 0
    %207 = vmatprep.subr.bf16.mxu0 0
    %208 = vmatpush2.bf16.msra.mxu0 0
    %209 = vmatprep.subr.bf16.mxu0 0
    %210 = vmatpush2.bf16.msra.mxu0 0
    %211 = vmatprep.subr.bf16.mxu0 0
    %212 = vmatpush2.bf16.msra.mxu0 0
    %213 = vmatprep.mubr.bf16.mxu0 0
    %214 = vmatmul.mubr.bf16.gmra.mxu0 %v127
    %v215 = vpop.f32.mrf.mxu0
    %v216 = vadd.f32 %v179, %v215
    %v217 = vpop.f32.mrf.mxu0
    %v218 = vpop.f32.mrf.mxu0
    %v219 = vpop.f32.mrf.mxu0
    %220 = vdwg.mxu0
    %v221 = vtanh.pop %v216
    %v222 = vpack.c.bf16 %v221, %v221
    %v223 = vrot.slane %v93, 2
    %v224 = vrot.slane %v96, 1
    %v225 = vsel %vm123, %v224, %v223
    %227 = vmatprep.subr.bf16.mxu0 0
    %228 = vmatpush1.bf16.msra.mxu0 %v167
    %229 = vmatprep.subr.bf16.mxu0 0
    %230 = vmatpush1.bf16.msra.mxu0 %v166
    %231 = vmatprep.subr.bf16.mxu0 0
    %232 = vmatpush1.bf16.msra.mxu0 %v165
    %233 = vmatprep.subr.bf16.mxu0 0
    %234 = vmatpush1.bf16.msra.mxu0 %v164
    %235 = vmatprep.subr.bf16.mxu0 0
    %236 = vmatpush1.bf16.msra.mxu0 %v163
    %237 = vmatprep.subr.bf16.mxu0 0
    %238 = vmatpush1.bf16.msra.mxu0 %v162
    %239 = vmatprep.subr.bf16.mxu0 0
    %240 = vmatpush1.bf16.msra.mxu0 %v161
    %241 = vmatprep.subr.bf16.mxu0 0
    %242 = vmatpush1.bf16.msra.mxu0 %v160
    %243 = vmatprep.subr.bf16.mxu0 0
    %244 = vmatpush2.bf16.msra.mxu0 0
    %245 = vmatprep.subr.bf16.mxu0 0
    %246 = vmatpush2.bf16.msra.mxu0 0
    %247 = vmatprep.subr.bf16.mxu0 0
    %248 = vmatpush2.bf16.msra.mxu0 0
    %249 = vmatprep.subr.bf16.mxu0 0
    %250 = vmatpush2.bf16.msra.mxu0 0
    %251 = vmatprep.subr.bf16.mxu0 0
    %252 = vmatpush2.bf16.msra.mxu0 0
    %253 = vmatprep.subr.bf16.mxu0 0
    %254 = vmatpush2.bf16.msra.mxu0 0
    %255 = vmatprep.subr.bf16.mxu0 0
    %256 = vmatpush2.bf16.msra.mxu0 0
    %257 = vmatprep.subr.bf16.mxu0 0
    %258 = vmatpush2.bf16.msra.mxu0 0
    %259 = vmatprep.mubr.bf16.mxu0 0
    %260 = vmatmul.mubr.bf16.gmra.mxu0 %v222
    %v261 = vpop.f32.mrf.mxu0
    %v262 = vadd.f32 %v225, %v261
    %v263 = vpop.f32.mrf.mxu0
    %v264 = vpop.f32.mrf.mxu0
    %v265 = vpop.f32.mrf.mxu0
    %266 = vdwg.mxu0
    %v267 = vtanh.pop %v262
    %v268 = vpack.c.bf16 %v267, %v267
    %v269 = vrot.slane %v93, 3
    %v270 = vrot.slane %v96, 2
    %v271 = vsel %vm123, %v270, %v269
    %273 = vmatprep.subr.bf16.mxu0 0
    %274 = vmatpush1.bf16.msra.mxu0 %v167
    %275 = vmatprep.subr.bf16.mxu0 0
    %276 = vmatpush1.bf16.msra.mxu0 %v166
    %277 = vmatprep.subr.bf16.mxu0 0
    %278 = vmatpush1.bf16.msra.mxu0 %v165
    %279 = vmatprep.subr.bf16.mxu0 0
    %280 = vmatpush1.bf16.msra.mxu0 %v164
    %281 = vmatprep.subr.bf16.mxu0 0
    %282 = vmatpush1.bf16.msra.mxu0 %v163
    %283 = vmatprep.subr.bf16.mxu0 0
    %284 = vmatpush1.bf16.msra.mxu0 %v162
    %285 = vmatprep.subr.bf16.mxu0 0
    %286 = vmatpush1.bf16.msra.mxu0 %v161
    %287 = vmatprep.subr.bf16.mxu0 0
    %288 = vmatpush1.bf16.msra.mxu0 %v160
    %289 = vmatprep.subr.bf16.mxu0 0
    %290 = vmatpush2.bf16.msra.mxu0 0
    %291 = vmatprep.subr.bf16.mxu0 0
    %292 = vmatpush2.bf16.msra.mxu0 0
    %293 = vmatprep.subr.bf16.mxu0 0
    %294 = vmatpush2.bf16.msra.mxu0 0
    %295 = vmatprep.subr.bf16.mxu0 0
    %296 = vmatpush2.bf16.msra.mxu0 0
    %297 = vmatprep.subr.bf16.mxu0 0
    %298 = vmatpush2.bf16.msra.mxu0 0
    %299 = vmatprep.subr.bf16.mxu0 0
    %300 = vmatpush2.bf16.msra.mxu0 0
    %301 = vmatprep.subr.bf16.mxu0 0
    %302 = vmatpush2.bf16.msra.mxu0 0
    %303 = vmatprep.subr.bf16.mxu0 0
    %304 = vmatpush2.bf16.msra.mxu0 0
    %305 = vmatprep.mubr.bf16.mxu0 0
    %306 = vmatmul.mubr.bf16.gmra.mxu0 %v268
    %v307 = vpop.f32.mrf.mxu0
    %v308 = vadd.f32 %v271, %v307
    %v309 = vpop.f32.mrf.mxu0
    %v310 = vpop.f32.mrf.mxu0
    %v311 = vpop.f32.mrf.mxu0
    %312 = vdwg.mxu0
    %v313 = vtanh.pop %v308
    %v314 = vpack.c.bf16 %v313, %v313
    %v315 = vrot.slane %v93, 4
    %v316 = vrot.slane %v96, 3
    %v317 = vsel %vm123, %v316, %v315
    %319 = vmatprep.subr.bf16.mxu0 0
    %320 = vmatpush1.bf16.msra.mxu0 %v167
    %321 = vmatprep.subr.bf16.mxu0 0
    %322 = vmatpush1.bf16.msra.mxu0 %v166
    %323 = vmatprep.subr.bf16.mxu0 0
    %324 = vmatpush1.bf16.msra.mxu0 %v165
    %325 = vmatprep.subr.bf16.mxu0 0
    %326 = vmatpush1.bf16.msra.mxu0 %v164
    %327 = vmatprep.subr.bf16.mxu0 0
    %328 = vmatpush1.bf16.msra.mxu0 %v163
    %329 = vmatprep.subr.bf16.mxu0 0
    %330 = vmatpush1.bf16.msra.mxu0 %v162
    %331 = vmatprep.subr.bf16.mxu0 0
    %332 = vmatpush1.bf16.msra.mxu0 %v161
    %333 = vmatprep.subr.bf16.mxu0 0
    %334 = vmatpush1.bf16.msra.mxu0 %v160
    %335 = vmatprep.subr.bf16.mxu0 0
    %336 = vmatpush2.bf16.msra.mxu0 0
    %337 = vmatprep.subr.bf16.mxu0 0
    %338 = vmatpush2.bf16.msra.mxu0 0
    %339 = vmatprep.subr.bf16.mxu0 0
    %340 = vmatpush2.bf16.msra.mxu0 0
    %341 = vmatprep.subr.bf16.mxu0 0
    %342 = vmatpush2.bf16.msra.mxu0 0
    %343 = vmatprep.subr.bf16.mxu0 0
    %344 = vmatpush2.bf16.msra.mxu0 0
    %345 = vmatprep.subr.bf16.mxu0 0
    %346 = vmatpush2.bf16.msra.mxu0 0
    %347 = vmatprep.subr.bf16.mxu0 0
    %348 = vmatpush2.bf16.msra.mxu0 0
    %349 = vmatprep.subr.bf16.mxu0 0
    %350 = vmatpush2.bf16.msra.mxu0 0
    %351 = vmatprep.mubr.bf16.mxu0 0
    %352 = vmatmul.mubr.bf16.gmra.mxu0 %v314
    %v353 = vpop.f32.mrf.mxu0
    %v354 = vadd.f32 %v317, %v353
    %v355 = vpop.f32.mrf.mxu0
    %v356 = vpop.f32.mrf.mxu0
    %v357 = vpop.f32.mrf.mxu0
    %358 = vdwg.mxu0
    %v359 = vtanh.pop %v354
    %v360 = vpack.c.bf16 %v359, %v359
    %v361 = vrot.slane %v93, 5
    %v362 = vrot.slane %v96, 4
    %v363 = vsel %vm123, %v362, %v361
    %365 = vmatprep.subr.bf16.mxu0 0
    %366 = vmatpush1.bf16.msra.mxu0 %v167
    %367 = vmatprep.subr.bf16.mxu0 0
    %368 = vmatpush1.bf16.msra.mxu0 %v166
    %369 = vmatprep.subr.bf16.mxu0 0
    %370 = vmatpush1.bf16.msra.mxu0 %v165
    %371 = vmatprep.subr.bf16.mxu0 0
    %372 = vmatpush1.bf16.msra.mxu0 %v164
    %373 = vmatprep.subr.bf16.mxu0 0
    %374 = vmatpush1.bf16.msra.mxu0 %v163
    %375 = vmatprep.subr.bf16.mxu0 0
    %376 = vmatpush1.bf16.msra.mxu0 %v162
    %377 = vmatprep.subr.bf16.mxu0 0
    %378 = vmatpush1.bf16.msra.mxu0 %v161
    %379 = vmatprep.subr.bf16.mxu0 0
    %380 = vmatpush1.bf16.msra.mxu0 %v160
    %381 = vmatprep.subr.bf16.mxu0 0
    %382 = vmatpush2.bf16.msra.mxu0 0
    %383 = vmatprep.subr.bf16.mxu0 0
    %384 = vmatpush2.bf16.msra.mxu0 0
    %385 = vmatprep.subr.bf16.mxu0 0
    %386 = vmatpush2.bf16.msra.mxu0 0
    %387 = vmatprep.subr.bf16.mxu0 0
    %388 = vmatpush2.bf16.msra.mxu0 0
    %389 = vmatprep.subr.bf16.mxu0 0
    %390 = vmatpush2.bf16.msra.mxu0 0
    %391 = vmatprep.subr.bf16.mxu0 0
    %392 = vmatpush2.bf16.msra.mxu0 0
    %393 = vmatprep.subr.bf16.mxu0 0
    %394 = vmatpush2.bf16.msra.mxu0 0
    %395 = vmatprep.subr.bf16.mxu0 0
    %396 = vmatpush2.bf16.msra.mxu0 0
    %397 = vmatprep.mubr.bf16.mxu0 0
    %398 = vmatmul.mubr.bf16.gmra.mxu0 %v360
    %v399 = vpop.f32.mrf.mxu0
    %v400 = vadd.f32 %v363, %v399
    %v401 = vpop.f32.mrf.mxu0
    %v402 = vpop.f32.mrf.mxu0
    %v403 = vpop.f32.mrf.mxu0
    %404 = vdwg.mxu0
    %v405 = vtanh.pop %v400
    %v406 = vpack.c.bf16 %v405, %v405
    %v407 = vrot.slane %v93, 6
    %v408 = vrot.slane %v96, 5
    %v409 = vsel %vm123, %v408, %v407
    %411 = vmatprep.subr.bf16.mxu0 0
    %412 = vmatpush1.bf16.msra.mxu0 %v167
    %413 = vmatprep.subr.bf16.mxu0 0
    %414 = vmatpush1.bf16.msra.mxu0 %v166
    %415 = vmatprep.subr.bf16.mxu0 0
    %416 = vmatpush1.bf16.msra.mxu0 %v165
    %417 = vmatprep.subr.bf16.mxu0 0
    %418 = vmatpush1.bf16.msra.mxu0 %v164
    %419 = vmatprep.subr.bf16.mxu0 0
    %420 = vmatpush1.bf16.msra.mxu0 %v163
    %421 = vmatprep.subr.bf16.mxu0 0
    %422 = vmatpush1.bf16.msra.mxu0 %v162
    %423 = vmatprep.subr.bf16.mxu0 0
    %424 = vmatpush1.bf16.msra.mxu0 %v161
    %425 = vmatprep.subr.bf16.mxu0 0
    %426 = vmatpush1.bf16.msra.mxu0 %v160
    %427 = vmatprep.subr.bf16.mxu0 0
    %428 = vmatpush2.bf16.msra.mxu0 0
    %429 = vmatprep.subr.bf16.mxu0 0
    %430 = vmatpush2.bf16.msra.mxu0 0
    %431 = vmatprep.subr.bf16.mxu0 0
    %432 = vmatpush2.bf16.msra.mxu0 0
    %433 = vmatprep.subr.bf16.mxu0 0
    %434 = vmatpush2.bf16.msra.mxu0 0
    %435 = vmatprep.subr.bf16.mxu0 0
    %436 = vmatpush2.bf16.msra.mxu0 0
    %437 = vmatprep.subr.bf16.mxu0 0
    %438 = vmatpush2.bf16.msra.mxu0 0
    %439 = vmatprep.subr.bf16.mxu0 0
    %440 = vmatpush2.bf16.msra.mxu0 0
    %441 = vmatprep.subr.bf16.mxu0 0
    %442 = vmatpush2.bf16.msra.mxu0 0
    %443 = vmatprep.mubr.bf16.mxu0 0
    %444 = vmatmul.mubr.bf16.gmra.mxu0 %v406
    %v445 = vpop.f32.mrf.mxu0
    %v446 = vadd.f32 %v409, %v445
    %v447 = vpop.f32.mrf.mxu0
    %v448 = vpop.f32.mrf.mxu0
    %v449 = vpop.f32.mrf.mxu0
    %450 = vdwg.mxu0
    %v451 = vtanh.pop %v446
    %v452 = vpack.c.bf16 %v451, %v451
    %v453 = vrot.slane %v93, 7
    %v454 = vrot.slane %v96, 6
    %v455 = vsel %vm123, %v454, %v453
    %457 = vmatprep.subr.bf16.mxu0 0
    %458 = vmatpush1.bf16.msra.mxu0 %v167
    %459 = vmatprep.subr.bf16.mxu0 0
    %460 = vmatpush1.bf16.msra.mxu0 %v166
    %461 = vmatprep.subr.bf16.mxu0 0
    %462 = vmatpush1.bf16.msra.mxu0 %v165
    %463 = vmatprep.subr.bf16.mxu0 0
    %464 = vmatpush1.bf16.msra.mxu0 %v164
    %465 = vmatprep.subr.bf16.mxu0 0
    %466 = vmatpush1.bf16.msra.mxu0 %v163
    %467 = vmatprep.subr.bf16.mxu0 0
    %468 = vmatpush1.bf16.msra.mxu0 %v162
    %469 = vmatprep.subr.bf16.mxu0 0
    %470 = vmatpush1.bf16.msra.mxu0 %v161
    %471 = vmatprep.subr.bf16.mxu0 0
    %472 = vmatpush1.bf16.msra.mxu0 %v160
    %473 = vmatprep.subr.bf16.mxu0 0
    %474 = vmatpush2.bf16.msra.mxu0 0
    %475 = vmatprep.subr.bf16.mxu0 0
    %476 = vmatpush2.bf16.msra.mxu0 0
    %477 = vmatprep.subr.bf16.mxu0 0
    %478 = vmatpush2.bf16.msra.mxu0 0
    %479 = vmatprep.subr.bf16.mxu0 0
    %480 = vmatpush2.bf16.msra.mxu0 0
    %481 = vmatprep.subr.bf16.mxu0 0
    %482 = vmatpush2.bf16.msra.mxu0 0
    %483 = vmatprep.subr.bf16.mxu0 0
    %484 = vmatpush2.bf16.msra.mxu0 0
    %485 = vmatprep.subr.bf16.mxu0 0
    %486 = vmatpush2.bf16.msra.mxu0 0
    %487 = vmatprep.subr.bf16.mxu0 0
    %488 = vmatpush2.bf16.msra.mxu0 0
    %489 = vmatprep.mubr.bf16.mxu0 0
    %490 = vmatmul.mubr.bf16.gmra.mxu0 %v452
    %v491 = vpop.f32.mrf.mxu0
    %v492 = vadd.f32 %v455, %v491
    %v493 = vpop.f32.mrf.mxu0
    %v494 = vpop.f32.mrf.mxu0
    %v495 = vpop.f32.mrf.mxu0
    %496 = vdwg.mxu0
    %v497 = vtanh.pop %v492
    %v498 = vpack.c.bf16 %v497, %v497
    %499 = vmatprep.subr.bf16.mxu0 0
    %500 = vmatpush1.bf16.msra.mxu0 %v167
    %501 = vmatprep.subr.bf16.mxu0 0
    %502 = vmatpush1.bf16.msra.mxu0 %v166
    %503 = vmatprep.subr.bf16.mxu0 0
    %504 = vmatpush1.bf16.msra.mxu0 %v165
    %505 = vmatprep.subr.bf16.mxu0 0
    %506 = vmatpush1.bf16.msra.mxu0 %v164
    %507 = vmatprep.subr.bf16.mxu0 0
    %508 = vmatpush1.bf16.msra.mxu0 %v163
    %509 = vmatprep.subr.bf16.mxu0 0
    %510 = vmatpush1.bf16.msra.mxu0 %v162
    %511 = vmatprep.subr.bf16.mxu0 0
    %512 = vmatpush1.bf16.msra.mxu0 %v161
    %513 = vmatprep.subr.bf16.mxu0 0
    %514 = vmatpush1.bf16.msra.mxu0 %v160
    %515 = vmatprep.subr.bf16.mxu0 0
    %516 = vmatpush2.bf16.msra.mxu0 0
    %517 = vmatprep.subr.bf16.mxu0 0
    %518 = vmatpush2.bf16.msra.mxu0 0
    %519 = vmatprep.subr.bf16.mxu0 0
    %520 = vmatpush2.bf16.msra.mxu0 0
    %521 = vmatprep.subr.bf16.mxu0 0
    %522 = vmatpush2.bf16.msra.mxu0 0
    %523 = vmatprep.subr.bf16.mxu0 0
    %524 = vmatpush2.bf16.msra.mxu0 0
    %525 = vmatprep.subr.bf16.mxu0 0
    %526 = vmatpush2.bf16.msra.mxu0 0
    %527 = vmatprep.subr.bf16.mxu0 0
    %528 = vmatpush2.bf16.msra.mxu0 0
    %529 = vmatprep.subr.bf16.mxu0 0
    %530 = vmatpush2.bf16.msra.mxu0 0
    %531 = vmatprep.mubr.bf16.mxu0 0
    %532 = vmatmul.mubr.bf16.gmra.mxu0 %v498
    %v533 = vpop.f32.mrf.mxu0
    %v534 = vadd.f32 %v48, %v533
    %v535 = vpop.f32.mrf.mxu0
    %v536 = vpop.f32.mrf.mxu0
    %v537 = vpop.f32.mrf.mxu0
    %538 = vdwg.mxu0
    %v539 = vtanh.pop %v534
    %v540 = vpack.c.bf16 %v539, %v539
    %v541 = vld [vmem:[%s4] sm:$0xf]
    %v542 = vld [vmem:[%s4 + $0x4] sm:$0xf]
    %v543 = vld [vmem:[%s4 + $0x8] sm:$0xf]
    %v544 = vld [vmem:[%s4 + $0xc] sm:$0xf]
    %v545 = vld [vmem:[%s4 + $0x10] sm:$0xf]
    %v546 = vld [vmem:[%s4 + $0x14] sm:$0xf]
    %v547 = vld [vmem:[%s4 + $0x18] sm:$0xf]
    %v548 = vld [vmem:[%s4 + $0x1c] sm:$0xf]
    %v549 = vld [vmem:[%s4 + $0x20] sm:$0xf]
    %v550 = vld [vmem:[%s4 + $0x24] sm:$0xf]
    %v551 = vld [vmem:[%s4 + $0x28] sm:$0xf]
    %v552 = vld [vmem:[%s4 + $0x2c] sm:$0xf]
    %v553 = vld [vmem:[%s4 + $0x30] sm:$0xf]
    %v554 = vld [vmem:[%s4 + $0x34] sm:$0xf]
    %v555 = vld [vmem:[%s4 + $0x38] sm:$0xf]
    %v556 = vld [vmem:[%s4 + $0x3c] sm:$0xf]
    %v557 = vld [vmem:[%s5] sm:$0x1]
    %v559 = vlaneseq
    %v560 = vshrl.u32 %v559, 7
    %v561 = vsub.s32 0, %v560
    %v562 = vrot.slane %v557, %v561
    %v580 = vunpack.c.l.b16 %v541
    %v581 = vunpack.c.l.b16 %v542
    %v582 = vunpack.c.l.b16 %v543
    %v583 = vunpack.c.l.b16 %v544
    %v584 = vunpack.c.l.b16 %v545
    %v585 = vunpack.c.l.b16 %v546
    %v586 = vunpack.c.l.b16 %v547
    %v587 = vunpack.c.l.b16 %v548
    %v588 = vunpack.c.l.b16 %v549
    %v589 = vunpack.c.l.b16 %v550
    %v590 = vunpack.c.l.b16 %v551
    %v591 = vunpack.c.l.b16 %v552
    %v592 = vunpack.c.l.b16 %v553
    %v593 = vunpack.c.l.b16 %v554
    %v594 = vunpack.c.l.b16 %v555
    %v595 = vunpack.c.l.b16 %v556
    %v596 = vpack.c.b16 %v581, %v580
    %v597 = vpack.c.b16 %v583, %v582
    %v598 = vpack.c.b16 %v585, %v584
    %v599 = vpack.c.b16 %v587, %v586
    %v600 = vpack.c.b16 %v589, %v588
    %v601 = vpack.c.b16 %v591, %v590
    %v602 = vpack.c.b16 %v593, %v592
    %v603 = vpack.c.b16 %v595, %v594
    %612 = vmatprep.subr.bf16.mxu0 0
    %613 = vmatpush1.bf16.msra.mxu0 %v603
    %614 = vmatprep.subr.bf16.mxu0 0
    %615 = vmatpush1.bf16.msra.mxu0 %v602
    %616 = vmatprep.subr.bf16.mxu0 0
    %617 = vmatpush1.bf16.msra.mxu0 %v601
    %618 = vmatprep.subr.bf16.mxu0 0
    %619 = vmatpush1.bf16.msra.mxu0 %v600
    %620 = vmatprep.subr.bf16.mxu0 0
    %621 = vmatpush1.bf16.msra.mxu0 %v599
    %622 = vmatprep.subr.bf16.mxu0 0
    %623 = vmatpush1.bf16.msra.mxu0 %v598
    %624 = vmatprep.subr.bf16.mxu0 0
    %625 = vmatpush1.bf16.msra.mxu0 %v597
    %626 = vmatprep.subr.bf16.mxu0 0
    %627 = vmatpush1.bf16.msra.mxu0 %v596
    %628 = vmatprep.subr.bf16.mxu0 0
    %629 = vmatpush2.bf16.msra.mxu0 0
    %630 = vmatprep.subr.bf16.mxu0 0
    %631 = vmatpush2.bf16.msra.mxu0 0
    %632 = vmatprep.subr.bf16.mxu0 0
    %633 = vmatpush2.bf16.msra.mxu0 0
    %634 = vmatprep.subr.bf16.mxu0 0
    %635 = vmatpush2.bf16.msra.mxu0 0
    %636 = vmatprep.subr.bf16.mxu0 0
    %637 = vmatpush2.bf16.msra.mxu0 0
    %638 = vmatprep.subr.bf16.mxu0 0
    %639 = vmatpush2.bf16.msra.mxu0 0
    %640 = vmatprep.subr.bf16.mxu0 0
    %641 = vmatpush2.bf16.msra.mxu0 0
    %642 = vmatprep.subr.bf16.mxu0 0
    %643 = vmatpush2.bf16.msra.mxu0 0
    %644 = vmatprep.mubr.bf16.mxu0 0
    %645 = vmatmul.mubr.bf16.gmra.mxu0 %v540
    %v646 = vpop.f32.mrf.mxu0
    %v647 = vadd.f32 %v562, %v646
    %v648 = vpop.f32.mrf.mxu0
    %v649 = vpop.f32.mrf.mxu0
    %v650 = vpop.f32.mrf.mxu0
    %651 = vdwg.mxu0
    %v652 = vmax.f32 %v647, 0.0
    %vm653 = vcmask 17408
    %654 = vst.msk [vmem:[#allocation5] sm:$0x3] %vm653, %v652
    // Predicated region
    $region30: #{rnn_model_forward.1} parent=1 // pred_check
      _
    $region31: #{rnn_model_forward.1} parent=1 // pred_check_branch
      %656 = sbr.rel (0) target = $region33
    $region32: #{rnn_model_forward.1} parent=1 // pred_region
      %s658 = ssub.s32 32, 32
      %659 = vsyncadd [#allocation4], %s658
      %s661 = sshll.u32 [#allocation5], 4
      %s662 = int_to_ptr.vmem [resolvable:$true] %s661
      %664 = dma.vmem_to_hbm [thread:$0]  %s662, 32, %s6, [#allocation4]
    $region33: #{rnn_model_forward.1} parent=1 // pred_fallthru
      _
    // Predicated region
    $region34: #{rnn_model_forward.1} parent=1 // pred_check
      _
    $region35: #{rnn_model_forward.1} parent=1 // pred_check_branch
      %666 = sbr.rel (0) target = $region37
    $region36: #{rnn_model_forward.1} parent=1 // pred_region
      %667 = dma.done [#allocation4], 32
    $region37: #{rnn_model_forward.1} parent=1 // pred_fallthru
      _
    %668 = vsyncpa [#allocation3], 1
    %669 = vsyncpa [#allocation4], 1

</llo_original>
